<compile_context>
chip_gen: v6e
topology: v6e:2x2x1
jax: 0.10.0
libtpu: 0.0.40
codegen_flags: <defaults>
</compile_context>

<pallas_src>
import functools

import jax
import jax.numpy as jnp
from jax.experimental import pallas as pl
from jax.experimental.pallas import tpu as pltpu


_TARGET_STEP_BYTES = 4 << 20   # ~2 MiB per streamed array per grid step
_VMEM_FRACTION_NUM = 3         # use 3/4 of physical VMEM as the scoped limit
_VMEM_FRACTION_DEN = 4


def _vmem_limit_bytes() -> int:
    """Per-generation VMEM budget (v5e/v6e: 128 MiB physical, v7x: 64 MiB)."""
    try:
        phys = int(pltpu.get_tpu_info().vmem_capacity_bytes)
    except Exception:  # interpret mode / older runtimes
        phys = 64 << 20  # conservative: v7x per-TensorCore physical VMEM
    return phys * _VMEM_FRACTION_NUM // _VMEM_FRACTION_DEN


def _select_tile_n(n_rows: int, bytes_per_row: int, vmem_limit: int) -> int:
    """Rows per grid step, sized by bytes moved per step rather than row count."""
    # Double-buffered pipeline (2 buffers per streamed array) must stay well
    # under the scoped VMEM limit, so cap the per-step footprint at ~limit/3.
    step_budget = min(_TARGET_STEP_BYTES, vmem_limit // 3)
    tile = step_budget // max(1, bytes_per_row)
    if tile >= n_rows:
        return n_rows
    return max(8, int(tile // 8) * 8)


def _nll_reduce_kernel(inp_ref, tgt_ref, out_ref, *, d, n_rows, tile_n,
                       steps_per_core):
    """Accumulates the sum of the loss into out_ref (one (1,1,1) block per core)."""
    c = pl.program_id(0)   # core axis ("parallel")
    i = pl.program_id(1)   # reduction steps ("arbitrary")

    @pl.when(i == 0)
    def _init():
        out_ref[...] = jnp.zeros_like(out_ref)

    mu = inp_ref[:, :d].astype(jnp.float32)                       # (tile_n, d)
    nlv = jnp.clip(inp_ref[:, pl.ds(d, 1)].astype(jnp.float32),
                   -20.0, 20.0)                                    # (tile_n, 1)
    t = tgt_ref[...].astype(jnp.float32)                           # (tile_n, d)

    diff = t - mu
    sq = jnp.sum(diff * diff, axis=1, keepdims=True)               # (tile_n, 1)
    # sum_d loss = exp(nlv) * sum_d (t - mu)^2 - d * nlv  -> no D-lane broadcast
    row_loss = jnp.exp(nlv) * sq - jnp.float32(d) * nlv            # (tile_n, 1)

    # Logical first row of this step (independent of any clamped block index).
    base = (c * steps_per_core + i) * tile_n

    @pl.when(base + tile_n <= n_rows)
    def _acc_dense():
        out_ref[...] += jnp.sum(row_loss).reshape((1, 1, 1))

    @pl.when(base + tile_n > n_rows)
    def _acc_masked():
        # Ragged last tile, or a fully out-of-range (duplicated) tile from the
        # 2-way split: zero padded rows via select before the reduction.
        r = base + jax.lax.broadcasted_iota(jnp.int32, row_loss.shape, 0)
        masked = jnp.where(r < n_rows, row_loss, 0.0)
        out_ref[...] += jnp.sum(masked).reshape((1, 1, 1))


def _nll_elem_kernel(inp_ref, tgt_ref, out_ref, *, d):
    """Writes the un-reduced element-wise loss for one row tile."""
    mu = inp_ref[:, :d].astype(jnp.float32)
    nlv = jnp.clip(inp_ref[:, pl.ds(d, 1)].astype(jnp.float32), -20.0, 20.0)
    t = tgt_ref[...].astype(jnp.float32)
    loss = jnp.exp(nlv) * (t - mu) ** 2 - nlv
    out_ref[...] = loss.astype(out_ref.dtype)


def nll_loss(inputs: jax.Array, target: jax.Array, reduction: str = "mean",
             tile_n: int | None = None) -> jax.Array:
    """Pallas implementation of the PyTorch NLLLoss module's forward pass."""
    assert inputs.ndim == 2 and target.ndim == 2
    n, c = inputs.shape
    d = c - 1
    assert target.shape == (n, d)

    vmem_limit = _vmem_limit_bytes()

    is_reduce = reduction in ("mean", "sum")
    bytes_per_row = c * inputs.dtype.itemsize + d * target.dtype.itemsize
    if not is_reduce:
        bytes_per_row += d * inputs.dtype.itemsize  # output stream

    if tile_n is None:
        tile_n = _select_tile_n(n, bytes_per_row, vmem_limit)
    else:
        tile_n = n if tile_n >= n else max(8, (tile_n // 8) * 8)

    total_blocks = -(-n // tile_n)
    in_bytes = (inputs.size * inputs.dtype.itemsize
                + target.size * target.dtype.itemsize)

    if is_reduce:
        # One accumulator per TensorCore (helps v7x; harmless on 1-TC chips).
        num_parallel = 2 if total_blocks >= 2 else 1
        steps_per_core = -(-total_blocks // num_parallel)

        def row_block_map(ci, ii):
            # Clamp so a fully out-of-range step (odd block count) re-reads the
            # last real block; the kernel masks it out by logical row index.
            return (jnp.minimum(ci * steps_per_core + ii, total_blocks - 1), 0)

        partials = pl.pallas_call(
            functools.partial(_nll_reduce_kernel, d=d, n_rows=n, tile_n=tile_n,
                              steps_per_core=steps_per_core),
            out_shape=jax.ShapeDtypeStruct((num_parallel, 1, 1), jnp.float32),
            grid=(num_parallel, steps_per_core),
            in_specs=[pl.BlockSpec((tile_n, c), row_block_map),
                      pl.BlockSpec((tile_n, d), row_block_map)],
            # Same block across the reduction axis -> VMEM-resident accumulator.
            out_specs=pl.BlockSpec((1, 1, 1), lambda ci, ii: (ci, 0, 0)),
            compiler_params=pltpu.CompilerParams(
                dimension_semantics=("parallel", "arbitrary"),
                vmem_limit_bytes=vmem_limit),
            cost_estimate=pl.CostEstimate(
                flops=4 * n * d, transcendentals=n,
                bytes_accessed=in_bytes + 4 * num_parallel),
        )(inputs, target)
        total = jnp.sum(partials)
        if reduction == "mean":
            return total / jnp.float32(n * d)
        return total
    else:  # 'none'
        # TODO(synk): for D < 128 the output stores are lane-sparse (masked
        # vst); a lane-dense relayout needs mu/neg_logvar as separate arrays.
        out_dtype = inputs.dtype
        return pl.pallas_call(
            functools.partial(_nll_elem_kernel, d=d),
            out_shape=jax.ShapeDtypeStruct((n, d), out_dtype),
            grid=(total_blocks,),
            in_specs=[pl.BlockSpec((tile_n, c), lambda i: (i, 0)),
                      pl.BlockSpec((tile_n, d), lambda i: (i, 0))],
            out_specs=pl.BlockSpec((tile_n, d), lambda i: (i, 0)),
            compiler_params=pltpu.CompilerParams(
                dimension_semantics=("parallel",),
                vmem_limit_bytes=vmem_limit),
            cost_estimate=pl.CostEstimate(
                flops=4 * n * d, transcendentals=n,
                bytes_accessed=in_bytes + n * d * jnp.dtype(out_dtype).itemsize),
        )(inputs, target)


def _reference_nll_loss(inputs, target, reduction="mean"):
    x = inputs.astype(jnp.float32)
    t = target.astype(jnp.float32)
    mu = x[:, :-1]
    neg_logvar = jnp.clip(x[:, -1:], -20.0, 20.0)
    loss = jnp.exp(neg_logvar) * (t - mu) ** 2 - neg_logvar
    if reduction == "mean":
        return loss.mean()
    elif reduction == "sum":
        return loss.sum()
    return loss


if __name__ == "__main__":
    key = jax.random.PRNGKey(0)
    k1, k2, k3, k4, k5, k6 = jax.random.split(key, 6)

    # Case 1: small f32, single tile (N, D+1) = (8, 33), target (8, 32).
    N, D = 8, 32
    inputs = jax.random.normal(k1, (N, D + 1), dtype=jnp.float32)
    target = jax.random.normal(k2, (N, D), dtype=jnp.float32)

    out_mean = jax.block_until_ready(nll_loss(inputs, target, reduction="mean"))
    out_sum = jax.block_until_ready(nll_loss(inputs, target, reduction="sum"))
    out_none = jax.block_until_ready(nll_loss(inputs, target, reduction="none"))

    assert jnp.allclose(out_mean, _reference_nll_loss(inputs, target, "mean"),
                        rtol=1e-5, atol=1e-5)
    assert jnp.allclose(out_sum, _reference_nll_loss(inputs, target, "sum"),
                        rtol=1e-5, atol=1e-4)
    assert jnp.allclose(out_none, _reference_nll_loss(inputs, target, "none"),
                        rtol=1e-5, atol=1e-5)

    # Case 2: f32, odd block count with a ragged last tile -> exercises the
    # 2-core split (clamped duplicate block) and the masked-row path.
    N2, tile = 20, 8  # 3 row blocks over a (2, 2) grid
    inputs2 = jax.random.normal(k3, (N2, D + 1), dtype=jnp.float32)
    target2 = jax.random.normal(k4, (N2, D), dtype=jnp.float32)

    m2 = jax.block_until_ready(nll_loss(inputs2, target2, "mean", tile_n=tile))
    s2 = jax.block_until_ready(nll_loss(inputs2, target2, "sum", tile_n=tile))
    e2 = jax.block_until_ready(nll_loss(inputs2, target2, "none", tile_n=tile))

    assert jnp.allclose(m2, _reference_nll_loss(inputs2, target2, "mean"),
                        rtol=1e-5, atol=1e-5)
    assert jnp.allclose(s2, _reference_nll_loss(inputs2, target2, "sum"),
                        rtol=1e-5, atol=1e-4)
    assert jnp.allclose(e2, _reference_nll_loss(inputs2, target2, "none"),
                        rtol=1e-5, atol=1e-5)

    # Case 3: bf16 inputs flow through untouched (no wrapper upcast), tiled.
    N3, tile3 = 32, 16
    inputs3 = jax.random.normal(k5, (N3, D + 1), dtype=jnp.bfloat16)
    target3 = jax.random.normal(k6, (N3, D), dtype=jnp.bfloat16)

    m3 = jax.block_until_ready(nll_loss(inputs3, target3, "mean", tile_n=tile3))
    e3 = jax.block_until_ready(nll_loss(inputs3, target3, "none", tile_n=tile3))

    ref_m3 = _reference_nll_loss(inputs3, target3, "mean")
    ref_e3 = _reference_nll_loss(inputs3, target3, "none")
    assert jnp.allclose(m3, ref_m3, rtol=1e-3, atol=1e-3)
    assert jnp.allclose(e3.astype(jnp.float32), ref_e3, rtol=2e-2, atol=2e-2)

    print("KERNEL_OK")
</pallas_src>

<mosaic_0001>
module attributes {stable_mosaic.version = 11 : i64} {
  func.func @_nll_reduce_kernel(%arg0: i32, %arg1: i32, %arg2: memref<8x33xf32, #tpu.memory_space<vmem>>, %arg3: memref<8x32xf32, #tpu.memory_space<vmem>>, %arg4: memref<1x1x1xf32, #tpu.memory_space<vmem>>) attributes {dimension_semantics = [#tpu.dimension_semantics<parallel>, #tpu.dimension_semantics<arbitrary>], iteration_bounds = array<i64: 1, 1>, scalar_prefetch = 0 : i64, scratch_operands = 0 : i64, tpu.core_type = #tpu.core_type<tc>, window_params = [{transform_indices = @transform_0, window_bounds = array<i64: 8, 33>}, {transform_indices = @transform_1, window_bounds = array<i64: 8, 32>}, {transform_indices = @transform_2, window_bounds = array<i64: 1, 1, 1>}]} {
    %c0_i32 = arith.constant 0 : i32
    %0 = arith.cmpi eq, %arg1, %c0_i32 : i32
    %1 = arith.extui %0 : i1 to i32
    %c0_i32_0 = arith.constant 0 : i32
    %2 = arith.cmpi ne, %1, %c0_i32_0 : i32
    scf.if %2 {
      %cst_14 = arith.constant 0.000000e+00 : f32
      %30 = vector.broadcast %cst_14 : f32 to vector<1x1x1xf32>
      %c0_15 = arith.constant 0 : index
      %c0_16 = arith.constant 0 : index
      %c0_17 = arith.constant 0 : index
      %31 = vector.load %arg4[%c0_15, %c0_16, %c0_17] : memref<1x1x1xf32, #tpu.memory_space<vmem>>, vector<1x1x1xf32>
      tpu.vector_store %arg4[%c0_15, %c0_16, %c0_17], %30 {strides = array<i32>} : memref<1x1x1xf32, #tpu.memory_space<vmem>>, vector<1x1x1xf32>,
    } else {
    }
    %c0 = arith.constant 0 : index
    %c0_1 = arith.constant 0 : index
    %3 = vector.load %arg2[%c0, %c0_1] : memref<8x33xf32, #tpu.memory_space<vmem>>, vector<8x32xf32>
    %c0_2 = arith.constant 0 : index
    %c32 = arith.constant 32 : index
    %4 = vector.load %arg2[%c0_2, %c32] : memref<8x33xf32, #tpu.memory_space<vmem>>, vector<8x1xf32>
    %cst = arith.constant -2.000000e+01 : f32
    %cst_3 = arith.constant 2.000000e+01 : f32
    %5 = vector.broadcast %cst : f32 to vector<8x1xf32>
    %6 = arith.maximumf %5, %4 : vector<8x1xf32>
    %7 = vector.broadcast %cst_3 : f32 to vector<8x1xf32>
    %8 = arith.minimumf %7, %6 : vector<8x1xf32>
    %c0_4 = arith.constant 0 : index
    %c0_5 = arith.constant 0 : index
    %9 = vector.load %arg3[%c0_4, %c0_5] : memref<8x32xf32, #tpu.memory_space<vmem>>, vector<8x32xf32>
    %10 = arith.subf %9, %3 : vector<8x32xf32>
    %11 = arith.mulf %10, %10 : vector<8x32xf32>
    %cst_6 = arith.constant dense<0.000000e+00> : vector<8xf32>
    %12 = vector.multi_reduction <add>, %11, %cst_6 [1] : vector<8x32xf32> to vector<8xf32>
    %13 = vector.shape_cast %12 : vector<8xf32> to vector<8x1xf32>
    %14 = math.exp %8 : vector<8x1xf32>
    %15 = arith.mulf %14, %13 : vector<8x1xf32>
    %cst_7 = arith.constant 3.200000e+01 : f32
    %16 = vector.broadcast %cst_7 : f32 to vector<8x1xf32>
    %17 = arith.mulf %16, %8 : vector<8x1xf32>
    %18 = arith.subf %15, %17 : vector<8x1xf32>
    %c1_i32 = arith.constant 1 : i32
    %19 = arith.muli %arg0, %c1_i32 : i32
    %20 = arith.addi %19, %arg1 : i32
    %c8_i32 = arith.constant 8 : i32
    %21 = arith.muli %20, %c8_i32 : i32
    %c8_i32_8 = arith.constant 8 : i32
    %22 = arith.addi %21, %c8_i32_8 : i32
    %c8_i32_9 = arith.constant 8 : i32
    %23 = arith.cmpi sle, %22, %c8_i32_9 : i32
    %24 = arith.extui %23 : i1 to i32
    %c0_i32_10 = arith.constant 0 : i32
    %25 = arith.cmpi ne, %24, %c0_i32_10 : i32
    scf.if %25 {
      %c0_14 = arith.constant 0 : index
      %c0_15 = arith.constant 0 : index
      %c0_16 = arith.constant 0 : index
      %30 = vector.load %arg4[%c0_14, %c0_15, %c0_16] : memref<1x1x1xf32, #tpu.memory_space<vmem>>, vector<1x1x1xf32>
      %31 = vector.shape_cast %18 : vector<8x1xf32> to vector<1x8x1xf32>
      %cst_17 = arith.constant dense<0.000000e+00> : vector<1xf32>
      %32 = vector.multi_reduction <add>, %31, %cst_17 [1, 2] : vector<1x8x1xf32> to vector<1xf32>
      %33 = vector.shape_cast %32 : vector<1xf32> to vector<1x1x1xf32>
      %34 = vector.extract %33[0, 0, 0] : f32 from vector<1x1x1xf32>
      %35 = vector.broadcast %34 : f32 to vector<1x1x1xf32>
      %36 = arith.addf %30, %35 : vector<1x1x1xf32>
      %c0_18 = arith.constant 0 : index
      %c0_19 = arith.constant 0 : index
      %c0_20 = arith.constant 0 : index
      %37 = vector.load %arg4[%c0_18, %c0_19, %c0_20] : memref<1x1x1xf32, #tpu.memory_space<vmem>>, vector<1x1x1xf32>
      tpu.vector_store %arg4[%c0_18, %c0_19, %c0_20], %36 {strides = array<i32>} : memref<1x1x1xf32, #tpu.memory_space<vmem>>, vector<1x1x1xf32>,
    } else {
    }
    %c8_i32_11 = arith.constant 8 : i32
    %26 = arith.addi %21, %c8_i32_11 : i32
    %c8_i32_12 = arith.constant 8 : i32
    %27 = arith.cmpi sgt, %26, %c8_i32_12 : i32
    %28 = arith.extui %27 : i1 to i32
    %c0_i32_13 = arith.constant 0 : i32
    %29 = arith.cmpi ne, %28, %c0_i32_13 : i32
    scf.if %29 {
      %30 = tpu.iota {dimensions = array<i32: 0>} : vector<8x1xi32>
      %31 = vector.broadcast %21 : i32 to vector<8x1xi32>
      %32 = arith.addi %31, %30 : vector<8x1xi32>
      %c8_i32_14 = arith.constant 8 : i32
      %33 = vector.broadcast %c8_i32_14 : i32 to vector<8x1xi32>
      %34 = arith.cmpi slt, %32, %33 : vector<8x1xi32>
      %cst_15 = arith.constant 0.000000e+00 : f32
      %35 = vector.broadcast %cst_15 : f32 to vector<8x1xf32>
      %36 = arith.select %34, %18, %35 : vector<8x1xi1>, vector<8x1xf32>
      %c0_16 = arith.constant 0 : index
      %c0_17 = arith.constant 0 : index
      %c0_18 = arith.constant 0 : index
      %37 = vector.load %arg4[%c0_16, %c0_17, %c0_18] : memref<1x1x1xf32, #tpu.memory_space<vmem>>, vector<1x1x1xf32>
      %38 = vector.shape_cast %36 : vector<8x1xf32> to vector<1x8x1xf32>
      %cst_19 = arith.constant dense<0.000000e+00> : vector<1xf32>
      %39 = vector.multi_reduction <add>, %38, %cst_19 [1, 2] : vector<1x8x1xf32> to vector<1xf32>
      %40 = vector.shape_cast %39 : vector<1xf32> to vector<1x1x1xf32>
      %41 = vector.extract %40[0, 0, 0] : f32 from vector<1x1x1xf32>
      %42 = vector.broadcast %41 : f32 to vector<1x1x1xf32>
      %43 = arith.addf %37, %42 : vector<1x1x1xf32>
      %c0_20 = arith.constant 0 : index
      %c0_21 = arith.constant 0 : index
      %c0_22 = arith.constant 0 : index
      %44 = vector.load %arg4[%c0_20, %c0_21, %c0_22] : memref<1x1x1xf32, #tpu.memory_space<vmem>>, vector<1x1x1xf32>
      tpu.vector_store %arg4[%c0_20, %c0_21, %c0_22], %43 {strides = array<i32>} : memref<1x1x1xf32, #tpu.memory_space<vmem>>, vector<1x1x1xf32>,
    } else {
    }
    return
  }
  func.func @transform_0(%arg0: i32, %arg1: i32) -> (i32, i32) {
    %c1_i32 = arith.constant 1 : i32
    %0 = arith.muli %arg0, %c1_i32 : i32
    %1 = arith.addi %0, %arg1 : i32
    %c0_i32 = arith.constant 0 : i32
    %2 = arith.minsi %1, %c0_i32 : i32
    %c0_i32_0 = arith.constant 0 : i32
    %c0_i32_1 = arith.constant 0 : i32
    return %2, %c0_i32_0 : i32, i32
  }
  func.func @transform_1(%arg0: i32, %arg1: i32) -> (i32, i32) {
    %c1_i32 = arith.constant 1 : i32
    %0 = arith.muli %arg0, %c1_i32 : i32
    %1 = arith.addi %0, %arg1 : i32
    %c0_i32 = arith.constant 0 : i32
    %2 = arith.minsi %1, %c0_i32 : i32
    %c0_i32_0 = arith.constant 0 : i32
    %c0_i32_1 = arith.constant 0 : i32
    return %2, %c0_i32_0 : i32, i32
  }
  func.func @transform_2(%arg0: i32, %arg1: i32) -> (i32, i32, i32) {
    %c0_i32 = arith.constant 0 : i32
    %c0_i32_0 = arith.constant 0 : i32
    %c0_i32_1 = arith.constant 0 : i32
    return %arg0, %c0_i32, %c0_i32_0 : i32, i32, i32
  }
}

</mosaic_0001>

<llo_original>
// kernel: tpu_custom_call.1
$region0: #{tpu_custom_call.1}
  #allocation0 [shape = 'u32[]', space=smem, size = 0x4, offset = 0x4, fixed_abs, tag = 'smem constant byte address 0x4 - core index']
  #allocation1 [shape = 'u32[144,128]{1,0:T(1,128)}', space=vmem, size = 0x12000, scoped, tag = 'internal scratch']
  %s0 = inlined_call_operand.hbm [shape: f32[8,33], index: 0, kind: input, shape index: {}]
  %s1 = inlined_call_operand.hbm [shape: f32[8,32], index: 1, kind: input, shape index: {}]
  %s2 = inlined_call_operand.hbm [shape: f32[1,1,1], index: 2, kind: output, shape index: {}]
  %s3 = sld [smem:[#allocation0]]
  $region38: #{tpu_custom_call.1} parent=0
    _
  %s5 = ssub.s32 1, %s3
  %s6 = scalar_select 0, %s5, %s3
  $region1: #{tpu_custom_call.1} parent=0
    #allocation2 [shape = 'u8[4096]{0}', space=vmem, size = 0x1000, scoped, tag = 'input window, operand 0, single buffered']
    #allocation3 [shape = 's32[1]{0}', space=sflag, size = 0x4, scoped, tag = 'scoped memory for tpu_custom_call.1']
    #allocation4 [shape = 's32[1]{0}', space=sflag, size = 0x4, scoped, tag = 'scoped memory for tpu_custom_call.1']
    #allocation5 [shape = 'u8[4096]{0}', space=vmem, size = 0x1000, scoped, tag = 'input window, operand 1, single buffered']
    #allocation6 [shape = 's32[1]{0}', space=sflag, size = 0x4, scoped, tag = 'scoped memory for tpu_custom_call.1']
    #allocation7 [shape = 'u8[512]{0}', space=vmem, size = 0x400, scoped, tag = 'output window, operand 0, single buffered']
    %7 = vsyncpa [#allocation3], 0
    %8 = vsyncpa [#allocation6], 0
    %9 = vsyncpa [#allocation4], 0
    // Predicated region
    $region2: #{tpu_custom_call.1} parent=1 // pred_check
      _
    $region3: #{tpu_custom_call.1} parent=1 // pred_check_branch
      %11 = sbr.rel (0) target = $region5
    $region4: #{tpu_custom_call.1} parent=1 // pred_region
      %s12 = sadd.s32 0, 0
      %p13 = scmp.lt.s32.totalorder %s12, 0
      %s14 = scalar_select %p13, %s12, 0
      %s16 = ssub.s32 128, 128
      %17 = vsyncadd [#allocation3], %s16
      %s18 = smul.addr %s14, 128
      %s19 = scalar_lea.hbm %s0, %s18
      %s21 = sshll.u32 [#allocation2], 4
      %s22 = int_to_ptr.vmem [resolvable:$true] %s21
      %24 = dma.hbm_to_vmem [thread:$0]  %s19, 128, %s22, [#allocation3]
    $region5: #{tpu_custom_call.1} parent=1 // pred_fallthru
      _
    // Predicated region
    $region6: #{tpu_custom_call.1} parent=1 // pred_check
      _
    $region7: #{tpu_custom_call.1} parent=1 // pred_check_branch
      %26 = sbr.rel (0) target = $region9
    $region8: #{tpu_custom_call.1} parent=1 // pred_region
      %s27 = sadd.s32 0, 0
      %p28 = scmp.lt.s32.totalorder %s27, 0
      %s29 = scalar_select %p28, %s27, 0
      %s31 = ssub.s32 128, 128
      %32 = vsyncadd [#allocation6], %s31
      %s33 = smul.addr %s29, 128
      %s34 = scalar_lea.hbm %s1, %s33
      %s36 = sshll.u32 [#allocation5], 4
      %s37 = int_to_ptr.vmem [resolvable:$true] %s36
      %39 = dma.hbm_to_vmem [thread:$0]  %s34, 128, %s37, [#allocation6]
    $region9: #{tpu_custom_call.1} parent=1 // pred_fallthru
      _
    // Predicated region
    $region10: #{tpu_custom_call.1} parent=1 // pred_check
      _
    $region11: #{tpu_custom_call.1} parent=1 // pred_check_branch
      %41 = sbr.rel (0) target = $region13
    $region12: #{tpu_custom_call.1} parent=1 // pred_region
      %42 = dma.done [#allocation3], 128
    $region13: #{tpu_custom_call.1} parent=1 // pred_fallthru
      _
    // Predicated region
    $region14: #{tpu_custom_call.1} parent=1 // pred_check
      _
    $region15: #{tpu_custom_call.1} parent=1 // pred_check_branch
      %44 = sbr.rel (0) target = $region17
    $region16: #{tpu_custom_call.1} parent=1 // pred_region
      %45 = dma.done [#allocation6], 128
    $region17: #{tpu_custom_call.1} parent=1 // pred_fallthru
      _
    %s46 = sadd.s32 0, 0
    %p47 = scmp.lt.s32.totalorder %s46, 0
    %s48 = scalar_select %p47, %s46, 0
    %s49 = sadd.s32 0, 0
    %p50 = scmp.lt.s32.totalorder %s49, 0
    %s51 = scalar_select %p50, %s49, 0
    %p52 = scmp.eq.s32.totalorder 0, 0
    // Predicated region
    $region18: #{tpu_custom_call.1} parent=1 // pred_check
      %p53 = pneg %p52
    $region19: #{tpu_custom_call.1} parent=1 // pred_check_branch
      %55 = sbr.rel (%p53) target = $region21
    $region20: #{tpu_custom_call.1} parent=1 // pred_region
      %vm56 = vcmask 0
      %57 = vst.msk [vmem:[#allocation7] sm:$0x1] %vm56, 0.0
    $region21: #{tpu_custom_call.1} parent=1 // pred_fallthru
      _
    %v58 = vld [vmem:[#allocation2] sm:$0xff]
    %v59 = vmax.f32 %v58, -20.0
    %v60 = vmin.f32 %v59, 20.0
    %v61 = vld [vmem:[#allocation5] sm:$0xff]
    %v62 = vsub.f32 %v61, %v58
    %v63 = vmul.f32 %v62, %v62
    %vm64 = vcmask 261120
    %v65 = vsel %vm64, %v63, 0.0
    %66 = vadd.xlane.f32.xlu0 %v65
    %v67 = vpop.xlane.xlu0 %66
    %v68 = vmul.f32 %v60, 1.442695
    %v69 = vpow.pop %v68
    %v70 = vmul.f32 %v69, %v67
    %v71 = vmul.f32 %v60, 32.0
    %v72 = vsub.f32 %v70, %v71
    %s73 = sadd.s32 0, 0
    %s74 = smul.u32 %s73, 8
    %s75 = sadd.s32 %s74, 8
    %p76 = scmp.le.s32.totalorder %s75, 8
    // Predicated region
    $region22: #{tpu_custom_call.1} parent=1 // pred_check
      %p77 = pneg %p76
    $region23: #{tpu_custom_call.1} parent=1 // pred_check_branch
      %79 = sbr.rel (%p77) target = $region25
    $region24: #{tpu_custom_call.1} parent=1 // pred_region
      %v80 = vld [vmem:[#allocation7] sm:$0x1]
      %82 = vrot.lane.b32.xlu0 %v72, 96
      %v83 = vpop.permute.xlu0 %82
      %vm85 = vcmask 7168
      %v86 = vsel %vm85, %v83, 0.0
      %87 = vadd.xlane.f32.xlu0 %v86
      %v88 = vpop.xlane.xlu0 %87
      %v89 = vrot.slane %v88, 4
      %v90 = vadd.f32 %v88, %v89
      %v91 = vrot.slane %v90, 2
      %v92 = vadd.f32 %v90, %v91
      %v93 = vrot.slane %v92, 1
      %v94 = vadd.f32 %v92, %v93
      %s95 = vtos %v94
      %v96 = vstv %s95
      %v97 = vadd.f32 %v80, %v96
      %vm98 = vcmask 0
      %99 = vst.msk [vmem:[#allocation7] sm:$0x1] %vm98, %v97
    $region25: #{tpu_custom_call.1} parent=1 // pred_fallthru
      _
    %p100 = scmp.gt.s32.totalorder %s75, 8
    // Predicated region
    $region26: #{tpu_custom_call.1} parent=1 // pred_check
      %p101 = pneg %p100
    $region27: #{tpu_custom_call.1} parent=1 // pred_check_branch
      %103 = sbr.rel (%p101) target = $region29
    $region28: #{tpu_custom_call.1} parent=1 // pred_region
      %v104 = vlaneseq
      %v105 = vshrl.u32 %v104, 7
      %v106 = vstv %s74
      %v107 = vadd.s32 %v106, %v105
      %vm108 = vcmp.lt.s32.totalorder %v107, 8
      %v109 = vsel %vm108, %v72, 0.0
      %v110 = vld [vmem:[#allocation7] sm:$0x1]
      %112 = vrot.lane.b32.xlu0 %v109, 96
      %v113 = vpop.permute.xlu0 %112
      %vm115 = vcmask 7168
      %v116 = vsel %vm115, %v113, 0.0
      %117 = vadd.xlane.f32.xlu0 %v116
      %v118 = vpop.xlane.xlu0 %117
      %v119 = vrot.slane %v118, 4
      %v120 = vadd.f32 %v118, %v119
      %v121 = vrot.slane %v120, 2
      %v122 = vadd.f32 %v120, %v121
      %v123 = vrot.slane %v122, 1
      %v124 = vadd.f32 %v122, %v123
      %s125 = vtos %v124
      %v126 = vstv %s125
      %v127 = vadd.f32 %v110, %v126
      %vm128 = vcmask 0
      %129 = vst.msk [vmem:[#allocation7] sm:$0x1] %vm128, %v127
    $region29: #{tpu_custom_call.1} parent=1 // pred_fallthru
      _
    // Predicated region
    $region30: #{tpu_custom_call.1} parent=1 // pred_check
      _
    $region31: #{tpu_custom_call.1} parent=1 // pred_check_branch
      %131 = sbr.rel (0) target = $region33
    $region32: #{tpu_custom_call.1} parent=1 // pred_region
      %s133 = ssub.s32 16, 16
      %134 = vsyncadd [#allocation4], %s133
      %s136 = sshll.u32 [#allocation7], 4
      %s137 = int_to_ptr.vmem [resolvable:$true] %s136
      %139 = dma.vmem_to_hbm [thread:$0]  %s137, 16, %s2, [#allocation4]
    $region33: #{tpu_custom_call.1} parent=1 // pred_fallthru
      _
    // Predicated region
    $region34: #{tpu_custom_call.1} parent=1 // pred_check
      _
    $region35: #{tpu_custom_call.1} parent=1 // pred_check_branch
      %141 = sbr.rel (0) target = $region37
    $region36: #{tpu_custom_call.1} parent=1 // pred_region
      %142 = dma.done [#allocation4], 16
    $region37: #{tpu_custom_call.1} parent=1 // pred_fallthru
      _
    %143 = vsyncpa [#allocation3], 1
    %144 = vsyncpa [#allocation6], 1
    %145 = vsyncpa [#allocation4], 1

</llo_original>
